<compile_context>
chip_gen: v7x
topology: tpu7x:2x2x1
jax: 0.10.0
libtpu: 0.0.40
codegen_flags: <defaults>
</compile_context>

<pallas_src>
import functools

import jax
import jax.numpy as jnp
from jax.experimental import pallas as pl
from jax.experimental.pallas import tpu as pltpu

_SUBLANE_PACK = {4: 8, 2: 16, 1: 32}  # itemsize -> sublane multiple


def _rmsnorm_kernel(x_ref, scale_ref, o_ref, *, eps: float):
    # x_ref: (row_tile, width) in VMEM; scale_ref: (1, width) in VMEM.
    x = x_ref[...].astype(jnp.float32)
    mean_sq = jnp.mean(x * x, axis=-1, keepdims=True)
    inv = jax.lax.rsqrt(mean_sq + eps)
    gain = 1.0 + scale_ref[...].astype(jnp.float32)  # (1, width), broadcasts
    # Re-cast from the ref for the output expression so the full f32 tile does
    # not have to stay live across the cross-lane reduction.
    o_ref[...] = (x_ref[...].astype(jnp.float32) * inv * gain).astype(o_ref.dtype)


def _vmem_capacity_bytes() -> int:
    try:
        return int(pltpu.get_tpu_info().vmem_capacity_bytes)
    except Exception:
        return 128 * 1024 * 1024  # conservative default (v5e/v6e)


def _choose_row_tile(rows: int, width: int, itemsize: int, sublane: int,
                     vmem_cap: int) -> int:
    # Per-row VMEM need ~ 2x input + 2x output (double-buffered) + f32 temps.
    budget = int(0.3 * vmem_cap)
    per_row_bytes = width * (4 * itemsize + 8)
    row_tile = budget // max(per_row_bytes, 1)
    row_tile = (row_tile // sublane) * sublane
    row_tile = max(sublane, min(1024, row_tile))
    # Keep >=4 grid steps when the row count allows, so the parallel axis can
    # shard across both TensorCores on v7x (no effect on 1-TC chips).
    quarter = ((rows // 4) // sublane) * sublane
    if quarter >= sublane:
        row_tile = min(row_tile, quarter)
    # Never exceed the (sublane-rounded) row count.
    rows_ceil = pl.cdiv(rows, sublane) * sublane
    return int(min(row_tile, rows_ceil))


def rms_norm(x: jax.Array, scale: jax.Array, eps: float = 1e-6,
             row_tile: int | None = None) -> jax.Array:
    """RMSNorm over the last axis of x, with learnable (1 + scale) gain."""
    orig_shape = x.shape
    width = orig_shape[-1]
    assert scale.shape == (width,)

    dtype = x.dtype
    itemsize = jnp.dtype(dtype).itemsize
    sublane = _SUBLANE_PACK.get(itemsize, 8)

    x2d = x.reshape(-1, width)
    rows = x2d.shape[0]
    scale2d = scale.reshape(1, width)

    vmem_cap = _vmem_capacity_bytes()
    if row_tile is None:
        rt = _choose_row_tile(rows, width, itemsize, sublane, vmem_cap)
    else:
        rt = max(sublane, (int(row_tile) // sublane) * sublane)

    grid = (pl.cdiv(rows, rt),)

    tile_bytes = rt * width * itemsize
    f32_tile_bytes = rt * width * 4
    vmem_needed = 4 * tile_bytes + 2 * f32_tile_bytes + (2 << 20)
    vmem_cap_limit = int(0.7 * vmem_cap)          # headroom for compiler scratch
    vmem_limit = int(min(vmem_cap_limit, max(32 * 1024 * 1024, vmem_needed)))

    cost = pl.CostEstimate(
        flops=4 * rows * width,
        transcendentals=rows,
        bytes_accessed=2 * rows * width * itemsize + width * itemsize,
    )

    out = pl.pallas_call(
        functools.partial(_rmsnorm_kernel, eps=eps),
        out_shape=jax.ShapeDtypeStruct((rows, width), dtype),
        grid_spec=pltpu.PrefetchScalarGridSpec(
            num_scalar_prefetch=0,
            grid=grid,
            in_specs=[
                pl.BlockSpec((rt, width), lambda i: (i, 0)),
                pl.BlockSpec((1, width), lambda i: (0, 0)),
            ],
            out_specs=pl.BlockSpec((rt, width), lambda i: (i, 0)),
        ),
        compiler_params=pltpu.CompilerParams(
            dimension_semantics=("parallel",),
            vmem_limit_bytes=vmem_limit,
        ),
        cost_estimate=cost,
    )(x2d, scale2d)

    return out.reshape(orig_shape)


if __name__ == "__main__":
    key = jax.random.PRNGKey(0)
    eps = 1e-6

    def ref(x, scale):
        var = jnp.mean(x.astype(jnp.float32) ** 2, axis=-1, keepdims=True)
        normed = x.astype(jnp.float32) * jax.lax.rsqrt(var + eps)
        gain = 1.0 + scale.astype(jnp.float32).reshape(
            (1,) * (x.ndim - 1) + (-1,))
        return (normed * gain).astype(x.dtype)

    ok = True

    # Case 1: shapes implied by the module (batch=2, seq=8, hidden=32), f32.
    # width=32 exercises the "last dim == full extent, no lane padding" path.
    batch, seq, width = 2, 8, 32
    kx, ks = jax.random.split(key)
    x = jax.random.normal(kx, (batch, seq, width), dtype=jnp.float32)
    scale_zero = jnp.zeros((width,), dtype=jnp.float32)     # PyTorch init
    scale_rand = 0.1 * jax.random.normal(ks, (width,), dtype=jnp.float32)
    for scale in (scale_zero, scale_rand):
        y = rms_norm(x, scale, eps=eps)
        jax.block_until_ready(y)
        ok = ok and bool(jnp.allclose(y, ref(x, scale), atol=1e-5, rtol=1e-5))

    # Case 2: ragged row count (exercises the partial last block, no padding).
    kx2, ks2 = jax.random.split(kx)
    x2 = jax.random.normal(kx2, (3, 5, width), dtype=jnp.float32)
    scale2 = 0.05 * jax.random.normal(ks2, (width,), dtype=jnp.float32)
    y2 = rms_norm(x2, scale2, eps=eps, row_tile=8)  # force multiple grid steps
    jax.block_until_ready(y2)
    ok = ok and bool(jnp.allclose(y2, ref(x2, scale2), atol=1e-5, rtol=1e-5))

    # Case 3: lane-dense width (multiple of 128), default tile selection.
    kx3, ks3 = jax.random.split(kx2)
    x3 = jax.random.normal(kx3, (2, 8, 256), dtype=jnp.float32)
    scale3 = 0.02 * jax.random.normal(ks3, (256,), dtype=jnp.float32)
    y3 = rms_norm(x3, scale3, eps=eps)
    jax.block_until_ready(y3)
    ok = ok and bool(jnp.allclose(y3, ref(x3, scale3), atol=1e-5, rtol=1e-5))

    if ok:
        print("KERNEL_OK")
    else:
        print("KERNEL_MISMATCH")
</pallas_src>

<mosaic_0001>
module attributes {stable_mosaic.version = 11 : i64} {
  func.func @_rmsnorm_kernel(%arg0: i32, %arg1: memref<16x32xf32, #tpu.memory_space<vmem>>, %arg2: memref<1x32xf32, #tpu.memory_space<vmem>>, %arg3: memref<16x32xf32, #tpu.memory_space<vmem>>) attributes {dimension_semantics = [#tpu.dimension_semantics<parallel>], iteration_bounds = array<i64: 1>, scalar_prefetch = 0 : i64, scratch_operands = 0 : i64, tpu.core_type = #tpu.core_type<tc>, window_params = [{transform_indices = @transform_0, window_bounds = array<i64: 16, 32>}, {pipeline_mode = #tpu.pipeline_mode<synchronous>, transform_indices = @transform_1, window_bounds = array<i64: 1, 32>}, {transform_indices = @transform_2, window_bounds = array<i64: 16, 32>}]} {
    %c0 = arith.constant 0 : index
    %c0_0 = arith.constant 0 : index
    %0 = vector.load %arg1[%c0, %c0_0] : memref<16x32xf32, #tpu.memory_space<vmem>>, vector<16x32xf32>
    %1 = arith.mulf %0, %0 : vector<16x32xf32>
    %cst = arith.constant dense<0.000000e+00> : vector<16xf32>
    %2 = vector.multi_reduction <add>, %1, %cst [1] : vector<16x32xf32> to vector<16xf32>
    %3 = vector.shape_cast %2 : vector<16xf32> to vector<16x1xf32>
    %cst_1 = arith.constant 3.200000e+01 : f32
    %4 = vector.broadcast %cst_1 : f32 to vector<16x1xf32>
    %5 = arith.divf %3, %4 : vector<16x1xf32>
    %cst_2 = arith.constant 9.99999997E-7 : f32
    %6 = vector.broadcast %cst_2 : f32 to vector<16x1xf32>
    %7 = arith.addf %5, %6 : vector<16x1xf32>
    %8 = math.rsqrt %7 : vector<16x1xf32>
    %c0_3 = arith.constant 0 : index
    %c0_4 = arith.constant 0 : index
    %9 = vector.load %arg2[%c0_3, %c0_4] : memref<1x32xf32, #tpu.memory_space<vmem>>, vector<1x32xf32>
    %cst_5 = arith.constant 1.000000e+00 : f32
    %10 = vector.broadcast %cst_5 : f32 to vector<1x32xf32>
    %11 = arith.addf %10, %9 : vector<1x32xf32>
    %c0_6 = arith.constant 0 : index
    %c0_7 = arith.constant 0 : index
    %12 = vector.load %arg1[%c0_6, %c0_7] : memref<16x32xf32, #tpu.memory_space<vmem>>, vector<16x32xf32>
    %13 = vector.broadcast %8 : vector<16x1xf32> to vector<16x32xf32>
    %14 = arith.mulf %12, %13 : vector<16x32xf32>
    %15 = vector.broadcast %11 : vector<1x32xf32> to vector<16x32xf32>
    %16 = arith.mulf %14, %15 : vector<16x32xf32>
    %c0_8 = arith.constant 0 : index
    %c0_9 = arith.constant 0 : index
    %17 = vector.load %arg3[%c0_8, %c0_9] : memref<16x32xf32, #tpu.memory_space<vmem>>, vector<16x32xf32>
    tpu.vector_store %arg3[%c0_8, %c0_9], %16 {strides = array<i32>} : memref<16x32xf32, #tpu.memory_space<vmem>>, vector<16x32xf32>,
    return
  }
  func.func @transform_0(%arg0: i32) -> (i32, i32) {
    %c0_i32 = arith.constant 0 : i32
    %c0_i32_0 = arith.constant 0 : i32
    return %arg0, %c0_i32 : i32, i32
  }
  func.func @transform_1(%arg0: i32) -> (i32, i32) {
    %c0_i32 = arith.constant 0 : i32
    %c0_i32_0 = arith.constant 0 : i32
    %c0_i32_1 = arith.constant 0 : i32
    return %c0_i32, %c0_i32_0 : i32, i32
  }
  func.func @transform_2(%arg0: i32) -> (i32, i32) {
    %c0_i32 = arith.constant 0 : i32
    %c0_i32_0 = arith.constant 0 : i32
    return %arg0, %c0_i32 : i32, i32
  }
}

</mosaic_0001>

<llo_original>
// kernel: tpu_custom_call.1
$region0: #{tpu_custom_call.1}
  #allocation0 [shape = 'u32[]', space=smem, size = 0x4, offset = 0x4, fixed_abs, tag = 'smem constant byte address 0x4 - core index']
  #allocation1 [shape = 'u32[144,128]{1,0:T(1,128)}', space=vmem, size = 0x12000, scoped, tag = 'internal scratch']
  %s0 = inlined_call_operand.hbm [shape: f32[16,32], index: 0, kind: input, shape index: {}]
  %s1 = inlined_call_operand.vmem [shape: f32[1,32], index: 1, kind: input, shape index: {}]
  %s2 = inlined_call_operand.hbm [shape: f32[16,32], index: 2, kind: output, shape index: {}]
  %s3 = sld [smem:[#allocation0]]
  $region22: #{tpu_custom_call.1} parent=0
    _
  %s5 = ssub.s32 1, %s3
  %s6 = scalar_select 0, %s5, %s3
  $region1: #{tpu_custom_call.1} parent=0
    #allocation2 [shape = 'u8[8192]{0}', space=vmem, size = 0x2000, scoped, tag = 'input window, operand 0, single buffered']
    #allocation3 [shape = 's32[1]{0}', space=sflag, size = 0x4, scoped, tag = 'scoped memory for tpu_custom_call.1']
    #allocation4 [shape = 's32[1]{0}', space=sflag, size = 0x4, scoped, tag = 'scoped memory for tpu_custom_call.1']
    #allocation5 [shape = 'u8[8192]{0}', space=vmem, size = 0x2000, scoped, tag = 'output window, operand 0, single buffered']
    %7 = vsyncpa [#allocation3], 0
    %8 = vsyncpa [#allocation4], 0
    // Predicated region
    $region2: #{tpu_custom_call.1} parent=1 // pred_check
      _
    $region3: #{tpu_custom_call.1} parent=1 // pred_check_branch
      %10 = sbr.rel (0) target = $region5
    $region4: #{tpu_custom_call.1} parent=1 // pred_region
      %s12 = ssub.s32 256, 256
      %13 = vsyncadd [#allocation3], %s12
      %s14 = sshll.u32 [#allocation2], 4
      %s15 = int_to_ptr.vmem [resolvable:$true] %s14
      %20 = dma.hbm_to_vmem [thread:$0]  %s0, 256, %s15, [#allocation3], 128, 128, 8
    $region5: #{tpu_custom_call.1} parent=1 // pred_fallthru
      _
    // Predicated region
    $region6: #{tpu_custom_call.1} parent=1 // pred_check
      _
    $region7: #{tpu_custom_call.1} parent=1 // pred_check_branch
      %22 = sbr.rel (0) target = $region9
    $region8: #{tpu_custom_call.1} parent=1 // pred_region
      _
    $region9: #{tpu_custom_call.1} parent=1 // pred_fallthru
      _
    // Predicated region
    $region10: #{tpu_custom_call.1} parent=1 // pred_check
      _
    $region11: #{tpu_custom_call.1} parent=1 // pred_check_branch
      %24 = sbr.rel (0) target = $region13
    $region12: #{tpu_custom_call.1} parent=1 // pred_region
      %25 = dma.done [#allocation3], 256
    $region13: #{tpu_custom_call.1} parent=1 // pred_fallthru
      _
    %v26 = vld [vmem:[#allocation2] sm:$0xff]
    %v27 = vld [vmem:[#allocation2 + $0x8] sm:$0xff]
    %v28 = vmul.f32 %v26, %v26
    %v29 = vmul.f32 %v27, %v27
    %vm30 = vcmask 261120
    %v31 = vsel %vm30, %v28, 0.0
    %32 = vadd.xlane.f32.xlu0 %v31
    %v33 = vpop.xlane.xlu0 %32
    %v34 = vsel %vm30, %v29, 0.0
    %35 = vadd.xlane.f32.xlu0 %v34
    %v36 = vpop.xlane.xlu0 %35
    %v37 = vrcp.pop 32.0
    %v38 = vmul.f32 %v33, %v37
    %v39 = vmul.f32 %v36, %v37
    %v40 = vadd.f32 %v38, 1e-06
    %v41 = vadd.f32 %v39, 1e-06
    %v42 = vrsqrt.pop %v40
    %v43 = vrsqrt.pop %v41
    %v44 = vld [vmem:[%s1] sm:$0x1]
    %v45 = vadd.f32 %v44, 1.0
    %v46 = vmul.f32 %v26, %v42
    %v47 = vmul.f32 %v27, %v43
    %v49 = vlaneseq
    %v50 = vshrl.u32 %v49, 7
    %v51 = vsub.s32 0, %v50
    %v52 = vrot.slane %v45, %v51
    %v54 = vmul.f32 %v46, %v52
    %v55 = vmul.f32 %v47, %v52
    %56 = vst.msk [vmem:[#allocation5] sm:$0xff] %vm30, %v54
    %57 = vst.msk [vmem:[#allocation5 + $0x8] sm:$0xff] %vm30, %v55
    // Predicated region
    $region14: #{tpu_custom_call.1} parent=1 // pred_check
      _
    $region15: #{tpu_custom_call.1} parent=1 // pred_check_branch
      %59 = sbr.rel (0) target = $region17
    $region16: #{tpu_custom_call.1} parent=1 // pred_region
      %s61 = ssub.s32 256, 256
      %62 = vsyncadd [#allocation4], %s61
      %s63 = sshll.u32 [#allocation5], 4
      %s64 = int_to_ptr.vmem [resolvable:$true] %s63
      %69 = dma.vmem_to_hbm [thread:$0]  %s64, 256, %s2, [#allocation4], 128, 128, 8
    $region17: #{tpu_custom_call.1} parent=1 // pred_fallthru
      _
    // Predicated region
    $region18: #{tpu_custom_call.1} parent=1 // pred_check
      _
    $region19: #{tpu_custom_call.1} parent=1 // pred_check_branch
      %71 = sbr.rel (0) target = $region21
    $region20: #{tpu_custom_call.1} parent=1 // pred_region
      %72 = dma.done [#allocation4], 256
    $region21: #{tpu_custom_call.1} parent=1 // pred_fallthru
      _
    %73 = vsyncpa [#allocation3], 1
    %74 = vsyncpa [#allocation4], 1

</llo_original>
